<compile_context>
chip_gen: v5e
topology: v5e:2x2
jax: 0.10.0
libtpu: 0.0.40
codegen_flags: <defaults>
</compile_context>

<pallas_src>
import functools

import jax
import jax.numpy as jnp
from jax.experimental import pallas as pl
from jax.experimental.pallas import tpu as pltpu


def _round_up(n, m):
    return ((n + m - 1) // m) * m


def _device_kind():
    try:
        return jax.devices()[0].device_kind.lower()
    except Exception:
        return ""


def _is_v5e(kind=None):
    kind = _device_kind() if kind is None else kind
    return ("v5 lite" in kind) or ("v5e" in kind)


def _vmem_budget_bytes(kind=None):
    """~70% of physical VMEM (generation-aware), leaving compiler headroom."""
    cap = None
    try:
        info = pltpu.get_tpu_info()
        cap = getattr(info, "vmem_capacity_bytes", None)
    except Exception:
        cap = None
    if not cap:
        kind = _device_kind() if kind is None else kind
        cap = (64 << 20) if ("7" in kind) else (128 << 20)
    return int(cap * 0.7)


# ---------------------------------------------------------------------------
# Kernel
# ---------------------------------------------------------------------------
def _eaa_kernel(x_ref, wqk_ref, bqk_ref, wp_ref, bp_ref, wf_ref, bf_ref, o_ref,
                *, flatten):
    Bt, N, Din = x_ref.shape
    Dp = wp_ref.shape[0]
    mm_dtype = wqk_ref.dtype
    f32 = jnp.float32

    # Cast to matmul dtype on the VMEM tile (no wrapper-side HBM pass).
    x = x_ref[...].astype(mm_dtype)

    def proj_norm(x2):
        # x2: [M, Din].  Fused Q/K projection: one lane-dense [Din, 2*Dp] matmul.
        y = jnp.dot(x2, wqk_ref[...], preferred_element_type=f32) + bqk_ref[...]
        q = y[:, :Dp]
        k = y[:, Dp:]
        # F.normalize(dim=-1): v / max(||v||, 1e-12) == v * rsqrt(max(sumsq, 1e-24)).
        qn = q * jax.lax.rsqrt(jnp.maximum(jnp.sum(q * q, -1, keepdims=True), 1e-24))
        kn = k * jax.lax.rsqrt(jnp.maximum(jnp.sum(k * k, -1, keepdims=True), 1e-24))
        return qn, kn

    def tail(gk, qn):
        # out = final(Proj(G * key) + query); f32 accumulate, bias adds in f32.
        hid = (jnp.dot(gk.astype(mm_dtype), wp_ref[...], preferred_element_type=f32)
               + bp_ref[...] + qn)
        return (jnp.dot(hid.astype(mm_dtype), wf_ref[...], preferred_element_type=f32)
                + bf_ref[...])

    if flatten:
        # N % 8 == 0: collapsing (Bt, N) is a free relayout -> one big matmul.
        qn, kn = proj_norm(x.reshape(Bt * N, Din))
        qn3 = qn.reshape(Bt, N, Dp)
        kn3 = kn.reshape(Bt, N, Dp)
        # softmax over a size-1 axis == 1  =>  G = sum_tokens(qn).
        g = jnp.sum(qn3, axis=1, keepdims=True)            # [Bt, 1, Dp]
        gk = (g * kn3).reshape(Bt * N, Dp)
        out = tail(gk, qn)                                  # [Bt*N, Din]
        o_ref[...] = out.reshape(Bt, N, Din).astype(o_ref.dtype)
    else:
        # N not 8-aligned: per-batch 2-D matmuls (static unroll, Bt is small).
        for b in range(Bt):
            qn, kn = proj_norm(x[b])                        # [N, Dp]
            g = jnp.sum(qn, axis=0, keepdims=True)          # [1, Dp]
            out = tail(g * kn, qn)                          # [N, Din]
            o_ref[b] = out.astype(o_ref.dtype)


# ---------------------------------------------------------------------------
# One-time parameter preparation (hoisted out of the per-call path).
# ---------------------------------------------------------------------------
def prepare_eaa_params(params, *, matmul_dtype=None):
    """Transpose / pad / fuse / cast the nn.Linear weights once per model."""
    wq, bq, wk, bk, _wg, wp, bp, wf, bf = params   # w_g unused: softmax(size-1) == 1
    D, Din = wq.shape
    Dp = _round_up(D, 128)
    if matmul_dtype is None:
        # v5e: lowest HBM BW / MXU; bf16 inputs are essentially free accuracy-wise.
        matmul_dtype = jnp.bfloat16 if _is_v5e() else wq.dtype
    mm = jnp.dtype(matmul_dtype)
    f32 = jnp.float32

    def padc(a, cols):
        return jnp.pad(a, ((0, 0), (0, cols - a.shape[1])))

    def padr(a, rows):
        return jnp.pad(a, ((0, rows - a.shape[0]), (0, 0)))

    def pad1(a, n):
        return jnp.pad(a, (0, n - a.shape[0]))

    # nn.Linear does x @ W.T, so pre-transpose.  Pad only the *output* channel
    # axes (lane-dense matmul outputs); padded rows/cols are exact zeros.
    wqk_t = jnp.concatenate([padc(wq.T.astype(f32), Dp),
                             padc(wk.T.astype(f32), Dp)], axis=1).astype(mm)  # [Din, 2Dp]
    bqk = jnp.concatenate([pad1(bq.astype(f32), Dp),
                           pad1(bk.astype(f32), Dp)]).reshape(1, 2 * Dp)
    wp_t = padr(padc(wp.T.astype(f32), Dp), Dp).astype(mm)                    # [Dp, Dp]
    bp2 = pad1(bp.astype(f32), Dp).reshape(1, Dp)
    wf_t = padr(wf.T.astype(f32), Dp).astype(mm)                              # [Dp, Din]
    bf2 = bf.astype(f32).reshape(1, Din)

    return dict(wqk_t=wqk_t, bqk=bqk, wp_t=wp_t, bp2=bp2, wf_t=wf_t, bf2=bf2,
                D=D, Din=Din, Dp=Dp, matmul_dtype=mm)


# ---------------------------------------------------------------------------
# Block sizing
# ---------------------------------------------------------------------------
def _choose_block_batch(B, N, Din, Dp, mm_itemsize, io_itemsize,
                        weight_bytes, vmem_budget, prefer_even_steps):
    """Largest divisor of B whose per-step VMEM footprint (double-buffered x/out
    blocks + f32/mm-dtype temporaries) fits the budget.  Keeps >= 2 grid steps
    when B >= 2, and on 2-TC chips prefers an even number of grid steps."""
    f32 = 4
    per_batch = N * (
        2 * Din * io_itemsize          # x block, double-buffered
        + 2 * Din * io_itemsize        # out block, double-buffered
        + Din * mm_itemsize            # x cast to matmul dtype
        + 3 * 2 * Dp * f32             # y, (q,k), (qn,kn)
        + 2 * Dp * f32                 # g*k, hid
        + 2 * Dp * mm_itemsize         # casts feeding the 2nd/3rd matmuls
        + Din * f32                    # final out before the store cast
    )
    usable = int(vmem_budget * 0.8) - weight_bytes
    best, best_key = 1, (-1, -1)
    for d in range(1, B + 1):
        if B % d:
            continue
        steps = B // d
        if B >= 2 and steps < 2:
            continue
        if d * per_batch > usable:
            continue
        even = 1 if (not prefer_even_steps or steps % 2 == 0) else 0
        key = (even, d)
        if key > best_key:
            best_key, best = key, d
    return best


# ---------------------------------------------------------------------------
# Forward
# ---------------------------------------------------------------------------
def efficient_additive_attention(x, prepared, *, block_batch=None):
    """x: [B, N, in_dims] -> [B, N, in_dims], using prepared params."""
    B, N, Din = x.shape
    assert Din == prepared["Din"], "in_dims mismatch between x and params"
    Dp = prepared["Dp"]
    mm_dtype = prepared["matmul_dtype"]
    orig_dtype = x.dtype

    kind = _device_kind()
    vmem_budget = _vmem_budget_bytes(kind)
    prefer_even = "7" in kind   # v7x: 2 TensorCores share the parallel grid axis

    wqk_t, bqk = prepared["wqk_t"], prepared["bqk"]
    wp_t, bp2 = prepared["wp_t"], prepared["bp2"]
    wf_t, bf2 = prepared["wf_t"], prepared["bf2"]

    weight_bytes = 2 * sum(int(a.size) * a.dtype.itemsize
                           for a in (wqk_t, bqk, wp_t, bp2, wf_t, bf2))

    if block_batch is None:
        block_batch = _choose_block_batch(
            B, N, Din, Dp,
            mm_itemsize=mm_dtype.itemsize,
            io_itemsize=jnp.dtype(orig_dtype).itemsize,
            weight_bytes=weight_bytes,
            vmem_budget=vmem_budget,
            prefer_even_steps=prefer_even)
    assert B % block_batch == 0, "block_batch must divide B"
    grid = (B // block_batch,)

    flatten = (N % 8) == 0   # (Bt, N) collapse is only free when N is 8-aligned

    def full_spec(arr):
        nd = arr.ndim
        return pl.BlockSpec(arr.shape, lambda b: (0,) * nd)

    kernel = functools.partial(_eaa_kernel, flatten=flatten)

    out = pl.pallas_call(
        kernel,
        out_shape=jax.ShapeDtypeStruct((B, N, Din), orig_dtype),
        grid_spec=pltpu.PrefetchScalarGridSpec(
            num_scalar_prefetch=0,
            grid=grid,
            in_specs=[
                pl.BlockSpec((block_batch, N, Din), lambda b: (b, 0, 0)),  # x (unpadded)
                full_spec(wqk_t),   # [Wq.T | Wk.T]  (Din, 2*Dp)
                full_spec(bqk),     # [bq | bk]      (1, 2*Dp)
                full_spec(wp_t),    # Wp.T           (Dp, Dp)
                full_spec(bp2),     # bp             (1, Dp)
                full_spec(wf_t),    # Wf.T           (Dp, Din)
                full_spec(bf2),     # bf             (1, Din)
            ],
            out_specs=pl.BlockSpec((block_batch, N, Din), lambda b: (b, 0, 0)),
        ),
        compiler_params=pltpu.CompilerParams(
            dimension_semantics=("parallel",),
            vmem_limit_bytes=int(vmem_budget)),
    )(x, wqk_t, bqk, wp_t, bp2, wf_t, bf2)
    return out


def efficient_additive_attention_raw(x, params, *, token_dim=None,
                                     matmul_dtype=None, block_batch=None):
    """Convenience wrapper taking raw nn.Module parameters."""
    del token_dim  # scale only affects the (identically 1.0) size-1 softmax
    prepared = prepare_eaa_params(params, matmul_dtype=matmul_dtype)
    return efficient_additive_attention(x, prepared, block_batch=block_batch)


# ---------------------------------------------------------------------------
# Pure-JAX reference mirroring the PyTorch forward exactly.
# ---------------------------------------------------------------------------
def _reference(x, params, *, token_dim):
    wq, bq, wk, bk, wg, wp, bp, wf, bf = params
    scale = float(token_dim) ** (-0.5)
    q = x @ wq.T + bq
    k = x @ wk.T + bk
    q = q / jnp.maximum(jnp.linalg.norm(q, axis=-1, keepdims=True), 1e-12)
    k = k / jnp.maximum(jnp.linalg.norm(k, axis=-1, keepdims=True), 1e-12)
    qw = q @ wg                       # [B, N, 1]
    A = jax.nn.softmax(qw * scale, axis=-1)
    G = jnp.sum(A * q, axis=1)        # [B, D]
    G = G[:, None, :]                 # repeat over tokens (broadcast)
    out = (G * k) @ wp.T + bp + q
    out = out @ wf.T + bf
    return out


if __name__ == "__main__":
    # Small, forward-consistent shapes.
    B, N = 2, 8
    in_dims, token_dim, num_heads = 32, 16, 2
    D = token_dim * num_heads

    key = jax.random.PRNGKey(0)
    ks = jax.random.split(key, 10)

    # Deterministic synthetic parameters (shapes per nn.Module __init__).
    wq = jax.random.normal(ks[0], (D, in_dims), jnp.float32) * 0.1
    bq = jax.random.normal(ks[1], (D,), jnp.float32) * 0.1
    wk = jax.random.normal(ks[2], (D, in_dims), jnp.float32) * 0.1
    bk = jax.random.normal(ks[3], (D,), jnp.float32) * 0.1
    wg = jax.random.normal(ks[4], (D, 1), jnp.float32)
    wp = jax.random.normal(ks[5], (D, D), jnp.float32) * 0.1
    bp = jax.random.normal(ks[6], (D,), jnp.float32) * 0.1
    wf = jax.random.normal(ks[7], (in_dims, D), jnp.float32) * 0.1
    bf = jax.random.normal(ks[8], (in_dims,), jnp.float32) * 0.1
    params = (wq, bq, wk, bk, wg, wp, bp, wf, bf)

    x = jax.random.normal(ks[9], (B, N, in_dims), jnp.float32)

    ref = _reference(x, params, token_dim=token_dim)

    # f32 MXU path — exact forward semantics, tight tolerance.
    prepared_f32 = prepare_eaa_params(params, matmul_dtype=jnp.float32)
    out = efficient_additive_attention(x, prepared_f32)
    out = jax.block_until_ready(out)
    assert out.shape == (B, N, in_dims)
    assert jnp.allclose(out, ref, atol=1e-4, rtol=1e-4), (
        f"f32 max abs diff {jnp.max(jnp.abs(out - ref))}")

    # bf16 MXU path — memory-bound fast path, relaxed tolerance.
    prepared_bf16 = prepare_eaa_params(params, matmul_dtype=jnp.bfloat16)
    out_bf = efficient_additive_attention(x, prepared_bf16)
    out_bf = jax.block_until_ready(out_bf)
    assert out_bf.shape == (B, N, in_dims)
    assert jnp.max(jnp.abs(out_bf - ref)) < 5e-2, (
        f"bf16 max abs diff {jnp.max(jnp.abs(out_bf - ref))}")

    print("KERNEL_OK")
</pallas_src>

<mosaic_0001>
module attributes {stable_mosaic.version = 11 : i64} {
  func.func @_eaa_kernel(%arg0: i32, %arg1: memref<1x8x32xf32, #tpu.memory_space<vmem>>, %arg2: memref<32x256xf32, #tpu.memory_space<vmem>>, %arg3: memref<1x256xf32, #tpu.memory_space<vmem>>, %arg4: memref<128x128xf32, #tpu.memory_space<vmem>>, %arg5: memref<1x128xf32, #tpu.memory_space<vmem>>, %arg6: memref<128x32xf32, #tpu.memory_space<vmem>>, %arg7: memref<1x32xf32, #tpu.memory_space<vmem>>, %arg8: memref<1x8x32xf32, #tpu.memory_space<vmem>>) attributes {dimension_semantics = [#tpu.dimension_semantics<parallel>], iteration_bounds = array<i64: 2>, scalar_prefetch = 0 : i64, scratch_operands = 0 : i64, tpu.core_type = #tpu.core_type<tc>, window_params = [{transform_indices = @transform_0, window_bounds = array<i64: 1, 8, 32>}, {pipeline_mode = #tpu.pipeline_mode<synchronous>, transform_indices = @transform_1, window_bounds = array<i64: 32, 256>}, {pipeline_mode = #tpu.pipeline_mode<synchronous>, transform_indices = @transform_2, window_bounds = array<i64: 1, 256>}, {pipeline_mode = #tpu.pipeline_mode<synchronous>, transform_indices = @transform_3, window_bounds = array<i64: 128, 128>}, {pipeline_mode = #tpu.pipeline_mode<synchronous>, transform_indices = @transform_4, window_bounds = array<i64: 1, 128>}, {pipeline_mode = #tpu.pipeline_mode<synchronous>, transform_indices = @transform_5, window_bounds = array<i64: 128, 32>}, {pipeline_mode = #tpu.pipeline_mode<synchronous>, transform_indices = @transform_6, window_bounds = array<i64: 1, 32>}, {transform_indices = @transform_7, window_bounds = array<i64: 1, 8, 32>}]} {
    %c0 = arith.constant 0 : index
    %c0_0 = arith.constant 0 : index
    %c0_1 = arith.constant 0 : index
    %0 = vector.load %arg1[%c0, %c0_0, %c0_1] : memref<1x8x32xf32, #tpu.memory_space<vmem>>, vector<1x8x32xf32>
    %1 = vector.shape_cast %0 : vector<1x8x32xf32> to vector<8x32xf32>
    %c0_2 = arith.constant 0 : index
    %c0_3 = arith.constant 0 : index
    %2 = vector.load %arg2[%c0_2, %c0_3] : memref<32x256xf32, #tpu.memory_space<vmem>>, vector<32x256xf32>
    %cst = arith.constant dense<0.000000e+00> : vector<8x256xf32>
    %3 = tpu.matmul %1, %2, %cst {dimension_numbers = #tpu.dot_dimension_numbers<[1], [0], [0], [1], [0, 0, 1, 1], [], []>} : vector<8x32xf32>, vector<32x256xf32>, vector<8x256xf32> -> vector<8x256xf32>
    %c0_4 = arith.constant 0 : index
    %c0_5 = arith.constant 0 : index
    %4 = vector.load %arg3[%c0_4, %c0_5] : memref<1x256xf32, #tpu.memory_space<vmem>>, vector<1x256xf32>
    %5 = vector.broadcast %4 : vector<1x256xf32> to vector<8x256xf32>
    %6 = arith.addf %3, %5 : vector<8x256xf32>
    %7 = vector.extract_strided_slice %6 {offsets = [0, 0], sizes = [8, 128], strides = [1, 1]} : vector<8x256xf32> to vector<8x128xf32>
    %8 = vector.extract_strided_slice %6 {offsets = [0, 128], sizes = [8, 128], strides = [1, 1]} : vector<8x256xf32> to vector<8x128xf32>
    %9 = arith.mulf %7, %7 : vector<8x128xf32>
    %cst_6 = arith.constant dense<0.000000e+00> : vector<8xf32>
    %10 = vector.multi_reduction <add>, %9, %cst_6 [1] : vector<8x128xf32> to vector<8xf32>
    %11 = vector.shape_cast %10 : vector<8xf32> to vector<8x1xf32>
    %cst_7 = arith.constant 1.000000e-24 : f32
    %12 = vector.broadcast %cst_7 : f32 to vector<8x1xf32>
    %13 = arith.maximumf %11, %12 : vector<8x1xf32>
    %14 = math.rsqrt %13 : vector<8x1xf32>
    %15 = vector.broadcast %14 : vector<8x1xf32> to vector<8x128xf32>
    %16 = arith.mulf %7, %15 : vector<8x128xf32>
    %17 = arith.mulf %8, %8 : vector<8x128xf32>
    %cst_8 = arith.constant dense<0.000000e+00> : vector<8xf32>
    %18 = vector.multi_reduction <add>, %17, %cst_8 [1] : vector<8x128xf32> to vector<8xf32>
    %19 = vector.shape_cast %18 : vector<8xf32> to vector<8x1xf32>
    %cst_9 = arith.constant 1.000000e-24 : f32
    %20 = vector.broadcast %cst_9 : f32 to vector<8x1xf32>
    %21 = arith.maximumf %19, %20 : vector<8x1xf32>
    %22 = math.rsqrt %21 : vector<8x1xf32>
    %23 = vector.broadcast %22 : vector<8x1xf32> to vector<8x128xf32>
    %24 = arith.mulf %8, %23 : vector<8x128xf32>
    %25 = vector.shape_cast %16 : vector<8x128xf32> to vector<1x8x128xf32>
    %26 = vector.shape_cast %24 : vector<8x128xf32> to vector<1x8x128xf32>
    %cst_10 = arith.constant dense<0.000000e+00> : vector<1x128xf32>
    %27 = vector.multi_reduction <add>, %25, %cst_10 [1] : vector<1x8x128xf32> to vector<1x128xf32>
    %28 = vector.shape_cast %27 : vector<1x128xf32> to vector<1x1x128xf32>
    %29 = vector.broadcast %28 : vector<1x1x128xf32> to vector<1x8x128xf32>
    %30 = arith.mulf %29, %26 : vector<1x8x128xf32>
    %31 = vector.shape_cast %30 : vector<1x8x128xf32> to vector<8x128xf32>
    %c0_11 = arith.constant 0 : index
    %c0_12 = arith.constant 0 : index
    %32 = vector.load %arg4[%c0_11, %c0_12] : memref<128x128xf32, #tpu.memory_space<vmem>>, vector<128x128xf32>
    %cst_13 = arith.constant dense<0.000000e+00> : vector<8x128xf32>
    %33 = tpu.matmul %31, %32, %cst_13 {dimension_numbers = #tpu.dot_dimension_numbers<[1], [0], [0], [1], [0, 0, 1, 1], [], []>} : vector<8x128xf32>, vector<128x128xf32>, vector<8x128xf32> -> vector<8x128xf32>
    %c0_14 = arith.constant 0 : index
    %c0_15 = arith.constant 0 : index
    %34 = vector.load %arg5[%c0_14, %c0_15] : memref<1x128xf32, #tpu.memory_space<vmem>>, vector<1x128xf32>
    %35 = vector.broadcast %34 : vector<1x128xf32> to vector<8x128xf32>
    %36 = arith.addf %33, %35 : vector<8x128xf32>
    %37 = arith.addf %36, %16 : vector<8x128xf32>
    %c0_16 = arith.constant 0 : index
    %c0_17 = arith.constant 0 : index
    %38 = vector.load %arg6[%c0_16, %c0_17] : memref<128x32xf32, #tpu.memory_space<vmem>>, vector<128x32xf32>
    %cst_18 = arith.constant dense<0.000000e+00> : vector<8x32xf32>
    %39 = tpu.matmul %37, %38, %cst_18 {dimension_numbers = #tpu.dot_dimension_numbers<[1], [0], [0], [1], [0, 0, 1, 1], [], []>} : vector<8x128xf32>, vector<128x32xf32>, vector<8x32xf32> -> vector<8x32xf32>
    %c0_19 = arith.constant 0 : index
    %c0_20 = arith.constant 0 : index
    %40 = vector.load %arg7[%c0_19, %c0_20] : memref<1x32xf32, #tpu.memory_space<vmem>>, vector<1x32xf32>
    %41 = vector.broadcast %40 : vector<1x32xf32> to vector<8x32xf32>
    %42 = arith.addf %39, %41 : vector<8x32xf32>
    %43 = vector.shape_cast %42 : vector<8x32xf32> to vector<1x8x32xf32>
    %c0_21 = arith.constant 0 : index
    %c0_22 = arith.constant 0 : index
    %c0_23 = arith.constant 0 : index
    %44 = vector.load %arg8[%c0_21, %c0_22, %c0_23] : memref<1x8x32xf32, #tpu.memory_space<vmem>>, vector<1x8x32xf32>
    tpu.vector_store %arg8[%c0_21, %c0_22, %c0_23], %43 {strides = array<i32>} : memref<1x8x32xf32, #tpu.memory_space<vmem>>, vector<1x8x32xf32>,
    return
  }
  func.func @transform_0(%arg0: i32) -> (i32, i32, i32) {
    %c0_i32 = arith.constant 0 : i32
    %c0_i32_0 = arith.constant 0 : i32
    %c0_i32_1 = arith.constant 0 : i32
    return %arg0, %c0_i32, %c0_i32_0 : i32, i32, i32
  }
  func.func @transform_1(%arg0: i32) -> (i32, i32) {
    %c0_i32 = arith.constant 0 : i32
    %c0_i32_0 = arith.constant 0 : i32
    %c0_i32_1 = arith.constant 0 : i32
    return %c0_i32, %c0_i32_0 : i32, i32
  }
  func.func @transform_2(%arg0: i32) -> (i32, i32) {
    %c0_i32 = arith.constant 0 : i32
    %c0_i32_0 = arith.constant 0 : i32
    %c0_i32_1 = arith.constant 0 : i32
    return %c0_i32, %c0_i32_0 : i32, i32
  }
  func.func @transform_3(%arg0: i32) -> (i32, i32) {
    %c0_i32 = arith.constant 0 : i32
    %c0_i32_0 = arith.constant 0 : i32
    %c0_i32_1 = arith.constant 0 : i32
    return %c0_i32, %c0_i32_0 : i32, i32
  }
  func.func @transform_4(%arg0: i32) -> (i32, i32) {
    %c0_i32 = arith.constant 0 : i32
    %c0_i32_0 = arith.constant 0 : i32
    %c0_i32_1 = arith.constant 0 : i32
    return %c0_i32, %c0_i32_0 : i32, i32
  }
  func.func @transform_5(%arg0: i32) -> (i32, i32) {
    %c0_i32 = arith.constant 0 : i32
    %c0_i32_0 = arith.constant 0 : i32
    %c0_i32_1 = arith.constant 0 : i32
    return %c0_i32, %c0_i32_0 : i32, i32
  }
  func.func @transform_6(%arg0: i32) -> (i32, i32) {
    %c0_i32 = arith.constant 0 : i32
    %c0_i32_0 = arith.constant 0 : i32
    %c0_i32_1 = arith.constant 0 : i32
    return %c0_i32, %c0_i32_0 : i32, i32
  }
  func.func @transform_7(%arg0: i32) -> (i32, i32, i32) {
    %c0_i32 = arith.constant 0 : i32
    %c0_i32_0 = arith.constant 0 : i32
    %c0_i32_1 = arith.constant 0 : i32
    return %arg0, %c0_i32, %c0_i32_0 : i32, i32, i32
  }
}

</mosaic_0001>

<llo_original>
// kernel: tpu_custom_call.1
$region0: #{tpu_custom_call.1}
  #allocation0 [shape = 'u32[]', space=smem, size = 0x4, offset = 0x4, fixed_abs, tag = 'smem constant byte address 0x4 - core index']
  #allocation1 [shape = 'u32[72,128]{1,0:T(1,128)}', space=vmem, size = 0x9000, scoped, tag = 'internal scratch']
  %s0 = inlined_call_operand.vmem [shape: f32[2,8,32], index: 0, kind: input, shape index: {}]
  %s1 = inlined_call_operand.hbm [shape: f32[32,256], index: 1, kind: input, shape index: {}]
  %s2 = inlined_call_operand.vmem [shape: f32[1,256], index: 2, kind: input, shape index: {}]
  %s3 = inlined_call_operand.vmem [shape: f32[128,128], index: 3, kind: input, shape index: {}]
  %s4 = inlined_call_operand.vmem [shape: f32[1,128], index: 4, kind: input, shape index: {}]
  %s5 = inlined_call_operand.vmem [shape: f32[128,32], index: 5, kind: input, shape index: {}]
  %s6 = inlined_call_operand.vmem [shape: f32[1,32], index: 6, kind: input, shape index: {}]
  %s7 = inlined_call_operand.hbm [shape: f32[2,8,32], index: 7, kind: output, shape index: {}]
  %s8 = sld [smem:[#allocation0]]
  $region65: #{tpu_custom_call.1} parent=0
    _
  %s10 = ssub.s32 1, %s8
  %s11 = scalar_select 0, %s10, %s8
  $region1: #{tpu_custom_call.1} parent=0
    #allocation2 [shape = 'u8[32768]{0}', space=vmem, size = 0x8000, scoped, tag = 'input window, operand 1, single buffered']
    #allocation3 [shape = 's32[2]{0}', space=sflag, size = 0x8, scoped, tag = 'scoped memory for tpu_custom_call.1']
    #allocation4 [shape = 's32[2]{0}', space=sflag, size = 0x8, scoped, tag = 'scoped memory for tpu_custom_call.1']
    #allocation5 [shape = 'u8[8192]{0}', space=vmem, size = 0x2000, scoped, tag = 'output window, operand 0']
    %12 = vsyncpa [#allocation3], 0
    %13 = vsyncpa [#allocation4], 0
    %s14 = scalar_lea.sflag [#allocation4], 1
    %15 = vsyncpa %s14, 0
    loop: start=0, step=1, limit=4
    $region2: #{tpu_custom_call.1} parent=1 // loop_pre_header
      _
    $region3: #{tpu_custom_call.1} parent=1 // loop_header
      %s17 = sphi 0, %s21
      %p18 = scmp.ge.s32.totalorder %s17, 4
      %s27 = sphi 0, %s29
      %s30 = sphi 0, %s27
      %s31 = sphi 0, %s30
      %s47 = sphi 0, %s31
      %s51 = sphi 0, %s51
      %s53 = sphi 0, %s51
      %s54 = sphi 0, %s53
      %s68 = sphi 0, %s54
      %s72 = sphi 0, %s72
      %s74 = sphi 0, %s72
      %s75 = sphi 0, %s74
      %s89 = sphi 0, %s75
      %s93 = sphi 0, %s93
      %s95 = sphi 0, %s93
      %s96 = sphi 0, %s95
      %s110 = sphi 0, %s96
      %s114 = sphi 0, %s114
      %s116 = sphi 0, %s114
      %s117 = sphi 0, %s116
      %s131 = sphi 0, %s117
      %s135 = sphi 0, %s135
      %s137 = sphi 0, %s135
      %s138 = sphi 0, %s137
      %s152 = sphi 0, %s138
      %s156 = sphi 0, %s156
      %s158 = sphi 0, %s156
      %s159 = sphi 0, %s158
      %s173 = sphi 0, %s159
      %s179 = sphi 0, %s181
      %s182 = sphi 0, %s179
      %s183 = sphi 0, %s182
      %s199 = sphi 0, %s183
    $region4: #{tpu_custom_call.1} parent=1 // loop_header_branch
      %20 = sbr.rel (%p18) target = $region8
    $region5: #{tpu_custom_call.1} parent=1 // loop_body
      %s22 = ssub.s32 %s17, 1
      %s23 = ssub.s32 %s17, 2
      %s24 = sadd.s32 %s17, 1
      %s25 = ssub.s32 %s17, %s24
      %p26 = scmp.eq.s32.totalorder %s25, 0
      %s28 = sadd.s32 %s27, 1
      %s29 = scalar_select %p26, %s27, %s28
      %p32 = pneg %p26
      %p33 = scmp.eq.s32.totalorder %s17, 1
      %p34 = por %p32, %p33
      %p35 = scmp.ne.s32.totalorder %s27, %s30
      %p36 = scmp.eq.s32.totalorder %s17, 0
      %p37 = por %p35, %p36
      %p38 = scmp.ne.s32.totalorder %s27, %s30
      %p39 = scmp.eq.s32.totalorder %s22, 1
      %p40 = por %p38, %p39
      %p41 = scmp.ne.s32.totalorder %s30, %s31
      %p42 = scmp.eq.s32.totalorder %s22, 0
      %p43 = por %p41, %p42
      %p44 = scmp.ne.s32.totalorder %s30, %s31
      %p45 = scmp.eq.s32.totalorder %s23, 1
      %p46 = por %p44, %p45
      %p48 = scmp.ne.s32.totalorder %s31, %s47
      %p49 = scmp.eq.s32.totalorder %s23, 0
      %p50 = por %p48, %p49
      %s52 = sadd.s32 %s51, 1
      %p55 = scmp.eq.s32.totalorder %s17, 1
      %p56 = scmp.ne.s32.totalorder %s51, %s53
      %p57 = scmp.eq.s32.totalorder %s17, 0
      %p58 = por %p56, %p57
      %p59 = scmp.ne.s32.totalorder %s51, %s53
      %p60 = scmp.eq.s32.totalorder %s22, 1
      %p61 = por %p59, %p60
      %p62 = scmp.ne.s32.totalorder %s53, %s54
      %p63 = scmp.eq.s32.totalorder %s22, 0
      %p64 = por %p62, %p63
      %p65 = scmp.ne.s32.totalorder %s53, %s54
      %p66 = scmp.eq.s32.totalorder %s23, 1
      %p67 = por %p65, %p66
      %p69 = scmp.ne.s32.totalorder %s54, %s68
      %p70 = scmp.eq.s32.totalorder %s23, 0
      %p71 = por %p69, %p70
      %s73 = sadd.s32 %s72, 1
      %p76 = scmp.eq.s32.totalorder %s17, 1
      %p77 = scmp.ne.s32.totalorder %s72, %s74
      %p78 = scmp.eq.s32.totalorder %s17, 0
      %p79 = por %p77, %p78
      %p80 = scmp.ne.s32.totalorder %s72, %s74
      %p81 = scmp.eq.s32.totalorder %s22, 1
      %p82 = por %p80, %p81
      %p83 = scmp.ne.s32.totalorder %s74, %s75
      %p84 = scmp.eq.s32.totalorder %s22, 0
      %p85 = por %p83, %p84
      %p86 = scmp.ne.s32.totalorder %s74, %s75
      %p87 = scmp.eq.s32.totalorder %s23, 1
      %p88 = por %p86, %p87
      %p90 = scmp.ne.s32.totalorder %s75, %s89
      %p91 = scmp.eq.s32.totalorder %s23, 0
      %p92 = por %p90, %p91
      %s94 = sadd.s32 %s93, 1
      %p97 = scmp.eq.s32.totalorder %s17, 1
      %p98 = scmp.ne.s32.totalorder %s93, %s95
      %p99 = scmp.eq.s32.totalorder %s17, 0
      %p100 = por %p98, %p99
      %p101 = scmp.ne.s32.totalorder %s93, %s95
      %p102 = scmp.eq.s32.totalorder %s22, 1
      %p103 = por %p101, %p102
      %p104 = scmp.ne.s32.totalorder %s95, %s96
      %p105 = scmp.eq.s32.totalorder %s22, 0
      %p106 = por %p104, %p105
      %p107 = scmp.ne.s32.totalorder %s95, %s96
      %p108 = scmp.eq.s32.totalorder %s23, 1
      %p109 = por %p107, %p108
      %p111 = scmp.ne.s32.totalorder %s96, %s110
      %p112 = scmp.eq.s32.totalorder %s23, 0
      %p113 = por %p111, %p112
      %s115 = sadd.s32 %s114, 1
      %p118 = scmp.eq.s32.totalorder %s17, 1
      %p119 = scmp.ne.s32.totalorder %s114, %s116
      %p120 = scmp.eq.s32.totalorder %s17, 0
      %p121 = por %p119, %p120
      %p122 = scmp.ne.s32.totalorder %s114, %s116
      %p123 = scmp.eq.s32.totalorder %s22, 1
      %p124 = por %p122, %p123
      %p125 = scmp.ne.s32.totalorder %s116, %s117
      %p126 = scmp.eq.s32.totalorder %s22, 0
      %p127 = por %p125, %p126
      %p128 = scmp.ne.s32.totalorder %s116, %s117
      %p129 = scmp.eq.s32.totalorder %s23, 1
      %p130 = por %p128, %p129
      %p132 = scmp.ne.s32.totalorder %s117, %s131
      %p133 = scmp.eq.s32.totalorder %s23, 0
      %p134 = por %p132, %p133
      %s136 = sadd.s32 %s135, 1
      %p139 = scmp.eq.s32.totalorder %s17, 1
      %p140 = scmp.ne.s32.totalorder %s135, %s137
      %p141 = scmp.eq.s32.totalorder %s17, 0
      %p142 = por %p140, %p141
      %p143 = scmp.ne.s32.totalorder %s135, %s137
      %p144 = scmp.eq.s32.totalorder %s22, 1
      %p145 = por %p143, %p144
      %p146 = scmp.ne.s32.totalorder %s137, %s138
      %p147 = scmp.eq.s32.totalorder %s22, 0
      %p148 = por %p146, %p147
      %p149 = scmp.ne.s32.totalorder %s137, %s138
      %p150 = scmp.eq.s32.totalorder %s23, 1
      %p151 = por %p149, %p150
      %p153 = scmp.ne.s32.totalorder %s138, %s152
      %p154 = scmp.eq.s32.totalorder %s23, 0
      %p155 = por %p153, %p154
      %s157 = sadd.s32 %s156, 1
      %p160 = scmp.eq.s32.totalorder %s17, 1
      %p161 = scmp.ne.s32.totalorder %s156, %s158
      %p162 = scmp.eq.s32.totalorder %s17, 0
      %p163 = por %p161, %p162
      %p164 = scmp.ne.s32.totalorder %s156, %s158
      %p165 = scmp.eq.s32.totalorder %s22, 1
      %p166 = por %p164, %p165
      %p167 = scmp.ne.s32.totalorder %s158, %s159
      %p168 = scmp.eq.s32.totalorder %s22, 0
      %p169 = por %p167, %p168
      %p170 = scmp.ne.s32.totalorder %s158, %s159
      %p171 = scmp.eq.s32.totalorder %s23, 1
      %p172 = por %p170, %p171
      %p174 = scmp.ne.s32.totalorder %s159, %s173
      %p175 = scmp.eq.s32.totalorder %s23, 0
      %p176 = por %p174, %p175
      %s177 = ssub.s32 %s17, %s24
      %p178 = scmp.eq.s32.totalorder %s177, 0
      %s180 = sadd.s32 %s179, 1
      %s181 = scalar_select %p178, %s179, %s180
      %p184 = pneg %p178
      %p185 = scmp.eq.s32.totalorder %s17, 1
      %p186 = por %p184, %p185
      %p187 = scmp.ne.s32.totalorder %s179, %s182
      %p188 = scmp.eq.s32.totalorder %s17, 0
      %p189 = por %p187, %p188
      %p190 = scmp.ne.s32.totalorder %s179, %s182
      %p191 = scmp.eq.s32.totalorder %s22, 1
      %p192 = por %p190, %p191
      %p193 = scmp.ne.s32.totalorder %s182, %s183
      %p194 = scmp.eq.s32.totalorder %s22, 0
      %p195 = por %p193, %p194
      %p196 = scmp.ne.s32.totalorder %s182, %s183
      %p197 = scmp.eq.s32.totalorder %s23, 1
      %p198 = por %p196, %p197
      %p200 = scmp.ne.s32.totalorder %s183, %s199
      %p201 = scmp.eq.s32.totalorder %s23, 0
      %p202 = por %p200, %p201
      %p203 = scmp.le.s32.totalorder 1, %s17
      %p204 = scmp.lt.s32.totalorder %s17, 3
      %p205 = pnand %p203, %p204
      %p206 = pneg %p205
      // Predicated region
      $region9: #{tpu_custom_call.1} parent=5 // pred_check
        _
      $region10: #{tpu_custom_call.1} parent=5 // pred_check_branch
        %208 = sbr.rel (%p205) target = $region12
      $region11: #{tpu_custom_call.1} parent=5 // pred_region
        %s209 = ssub.s32 %s17, 1
        // Predicated region
        $region13: #{tpu_custom_call.1} parent=11 // pred_check
          %p210 = pneg %p64
        $region14: #{tpu_custom_call.1} parent=11 // pred_check_branch
          %212 = sbr.rel (%p210) target = $region16
        $region15: #{tpu_custom_call.1} parent=11 // pred_region
          %214 = vsyncadd [#allocation3], 0
          %s215 = sshll.u32 %s1, 4
          %s216 = int_to_ptr.hbm [resolvable:$true] %s215
          %s217 = sshll.u32 [#allocation2], 4
          %s218 = int_to_ptr.vmem [resolvable:$true] %s217
          %223 = dma.hbm_to_vmem [thread:$0]  %s216, 1024, %s218, [#allocation3], 256, 256, 16
        $region16: #{tpu_custom_call.1} parent=11 // pred_fallthru
          _
        // Predicated region
        $region17: #{tpu_custom_call.1} parent=11 // pred_check
          %p224 = pneg %p85
        $region18: #{tpu_custom_call.1} parent=11 // pred_check_branch
          %226 = sbr.rel (%p224) target = $region20
        $region19: #{tpu_custom_call.1} parent=11 // pred_region
          _
        $region20: #{tpu_custom_call.1} parent=11 // pred_fallthru
          _
        // Predicated region
        $region21: #{tpu_custom_call.1} parent=11 // pred_check
          %p227 = pneg %p106
        $region22: #{tpu_custom_call.1} parent=11 // pred_check_branch
          %229 = sbr.rel (%p227) target = $region24
        $region23: #{tpu_custom_call.1} parent=11 // pred_region
          _
        $region24: #{tpu_custom_call.1} parent=11 // pred_fallthru
          _
        // Predicated region
        $region25: #{tpu_custom_call.1} parent=11 // pred_check
          %p230 = pneg %p127
        $region26: #{tpu_custom_call.1} parent=11 // pred_check_branch
          %232 = sbr.rel (%p230) target = $region28
        $region27: #{tpu_custom_call.1} parent=11 // pred_region
          _
        $region28: #{tpu_custom_call.1} parent=11 // pred_fallthru
          _
        // Predicated region
        $region29: #{tpu_custom_call.1} parent=11 // pred_check
          %p233 = pneg %p148
        $region30: #{tpu_custom_call.1} parent=11 // pred_check_branch
          %235 = sbr.rel (%p233) target = $region32
        $region31: #{tpu_custom_call.1} parent=11 // pred_region
          _
        $region32: #{tpu_custom_call.1} parent=11 // pred_fallthru
          _
        // Predicated region
        $region33: #{tpu_custom_call.1} parent=11 // pred_check
          %p236 = pneg %p169
        $region34: #{tpu_custom_call.1} parent=11 // pred_check_branch
          %238 = sbr.rel (%p236) target = $region36
        $region35: #{tpu_custom_call.1} parent=11 // pred_region
          _
        $region36: #{tpu_custom_call.1} parent=11 // pred_fallthru
          _
      $region12: #{tpu_custom_call.1} parent=5 // pred_fallthru
        _
      %p239 = scmp.lt.s32.totalorder %s17, 2
      // Predicated region
      $region37: #{tpu_custom_call.1} parent=5 // pred_check
        %p240 = pneg %p239
      $region38: #{tpu_custom_call.1} parent=5 // pred_check_branch
        %242 = sbr.rel (%p240) target = $region40
      $region39: #{tpu_custom_call.1} parent=5 // pred_region
        // Predicated region
        $region41: #{tpu_custom_call.1} parent=39 // pred_check
          %p243 = pneg %p37
        $region42: #{tpu_custom_call.1} parent=39 // pred_check_branch
          %245 = sbr.rel (%p243) target = $region44
        $region43: #{tpu_custom_call.1} parent=39 // pred_region
          %p246 = scmp.lt.s32.totalorder %s17, 1
          %s247 = scalar_select %p246, %s17, 1
          %s248 = smul.addr %s247, 8
          %s249 = scalar_lea.vmem %s0, %s248
        $region44: #{tpu_custom_call.1} parent=39 // pred_fallthru
          _
      $region40: #{tpu_custom_call.1} parent=5 // pred_fallthru
        _
      %p250 = scmp.le.s32.totalorder 1, %s17
      %p251 = scmp.lt.s32.totalorder %s17, 3
      %p252 = pnand %p250, %p251
      %p253 = pneg %p252
      // Predicated region
      $region45: #{tpu_custom_call.1} parent=5 // pred_check
        _
      $region46: #{tpu_custom_call.1} parent=5 // pred_check_branch
        %255 = sbr.rel (%p252) target = $region48
      $region47: #{tpu_custom_call.1} parent=5 // pred_region
        %s256 = ssub.s32 %s17, 1
        // Predicated region
        $region49: #{tpu_custom_call.1} parent=47 // pred_check
          %p257 = pneg %p64
        $region50: #{tpu_custom_call.1} parent=47 // pred_check_branch
          %259 = sbr.rel (%p257) target = $region52
        $region51: #{tpu_custom_call.1} parent=47 // pred_region
          %261 = dma.done [#allocation3], 1024
        $region52: #{tpu_custom_call.1} parent=47 // pred_fallthru
          _
        %p262 = scmp.lt.s32.totalorder %s22, 1
        %s263 = scalar_select %p262, %s22, 1
        %s264 = smul.addr %s263, 8
        %s265 = scalar_lea.vmem %s0, %s264
        %p266 = pneg %p43
        %p267 = pneg %p40
        %p268 = pneg %p64
        %p269 = pneg %p61
        %p270 = pneg %p85
        %p271 = pneg %p82
        %p272 = pneg %p106
        %p273 = pneg %p103
        %p274 = pneg %p127
        %p275 = pneg %p124
        %p276 = pneg %p148
        %p277 = pneg %p145
        %p278 = pneg %p169
        %p279 = pneg %p166
        %p280 = pneg %p195
        %p281 = pneg %p192
        %s282 = sand.u32 %s182, 1
        %s283 = scalar_lea.sflag [#allocation4], %s282
        %s284 = sand.u32 %s182, 1
        %s285 = smul.addr %s284, 8
        %s286 = scalar_lea.vmem [#allocation5], %s285
        %p287 = scmp.lt.s32.totalorder %s22, 1
        %s288 = scalar_select %p287, %s22, 1
        %s289 = smul.addr %s288, 8
        %s290 = scalar_lea.vmem %s0, %s289
        %v291 = vld [vmem:[%s290] sm:$0xff]
        %v292 = vld [vmem:[#allocation2] sm:$0xff]
        %v293 = vld [vmem:[#allocation2 + $0x8] sm:$0xff]
        %v294 = vld [vmem:[#allocation2 + $0x10] sm:$0xff]
        %v295 = vld [vmem:[#allocation2 + $0x18] sm:$0xff]
        %v296 = vld [vmem:[#allocation2 + $0x20] sm:$0xff]
        %v297 = vld [vmem:[#allocation2 + $0x28] sm:$0xff]
        %v298 = vld [vmem:[#allocation2 + $0x30] sm:$0xff]
        %v299 = vld [vmem:[#allocation2 + $0x38] sm:$0xff]
        %v300 = vld [vmem:[%s2] sm:$0x3]
        %v302 = vperm.slane %v300, 0
        %v303 = vperm.slane %v300, 1
        %vm306 = vcmask 261120
        %v308 = vsel %vm306, %v291, 0
        %310 = vmatpush.msra.mxu0 0.0
        %311 = vmatpush.msra.mxu0 0.0
        %312 = vmatpush.msra.mxu0 0.0
        %313 = vmatpush.msra.mxu0 0.0
        %314 = vmatpush.msra.mxu0 0.0
        %315 = vmatpush.msra.mxu0 0.0
        %316 = vmatpush.msra.mxu0 0.0
        %317 = vmatpush.msra.mxu0 0.0
        %318 = vmatpush.msra.mxu0 0.0
        %319 = vmatpush.msra.mxu0 0.0
        %320 = vmatpush.msra.mxu0 0.0
        %321 = vmatpush.msra.mxu0 0.0
        %322 = vmatpush.msra.mxu0 %v298
        %323 = vmatpush.msra.mxu0 %v296
        %324 = vmatpush.msra.mxu0 %v294
        %325 = vmatpush.msra.mxu0 %v292
        %326 = vmatmul.f32.gmra.mxu0 %v308
        %v327 = vpop.f32.mrf.mxu0
        %v328 = vadd.f32 %v302, %v327
        %329 = vdwg.mxu0
        %330 = vmatpush.msra.mxu0 0.0
        %331 = vmatpush.msra.mxu0 0.0
        %332 = vmatpush.msra.mxu0 0.0
        %333 = vmatpush.msra.mxu0 0.0
        %334 = vmatpush.msra.mxu0 0.0
        %335 = vmatpush.msra.mxu0 0.0
        %336 = vmatpush.msra.mxu0 0.0
        %337 = vmatpush.msra.mxu0 0.0
        %338 = vmatpush.msra.mxu0 0.0
        %339 = vmatpush.msra.mxu0 0.0
        %340 = vmatpush.msra.mxu0 0.0
        %341 = vmatpush.msra.mxu0 0.0
        %342 = vmatpush.msra.mxu0 %v299
        %343 = vmatpush.msra.mxu0 %v297
        %344 = vmatpush.msra.mxu0 %v295
        %345 = vmatpush.msra.mxu0 %v293
        %346 = vmatmul.f32.gmra.mxu0 %v308
        %v347 = vpop.f32.mrf.mxu0
        %v348 = vadd.f32 %v303, %v347
        %349 = vdwg.mxu0
        %v350 = vmul.f32 %v328, %v328
        %351 = vadd.xlane.f32.xlu0 %v350
        %v352 = vpop.xlane.xlu0 %351
        %v353 = vmax.f32 %v352, 1e-24
        %v354 = vrsqrt.pop %v353
        %v355 = vmul.f32 %v354, %v353
        %v356 = vmul.f32 %v355, %v354
        %v357 = vmul.f32 0.5, %v356
        %v358 = vsub.f32 1.5, %v357
        %v359 = vmul.f32 %v354, %v358
        %vm360 = vweird.f32 %v353
        %vm361 = vweird.f32 %v354
        %vm362 = vmor %vm360, %vm361
        %v363 = vsel %vm362, %v354, %v359
        %v364 = vmul.f32 %v328, %v363
        %v365 = vmul.f32 %v348, %v348
        %366 = vadd.xlane.f32.xlu0 %v365
        %v367 = vpop.xlane.xlu0 %366
        %v368 = vmax.f32 %v367, 1e-24
        %v369 = vrsqrt.pop %v368
        %v370 = vmul.f32 %v369, %v368
        %v371 = vmul.f32 %v370, %v369
        %v372 = vmul.f32 0.5, %v371
        %v373 = vsub.f32 1.5, %v372
        %v374 = vmul.f32 %v369, %v373
        %vm375 = vweird.f32 %v368
        %vm376 = vweird.f32 %v369
        %vm377 = vmor %vm375, %vm376
        %v378 = vsel %vm377, %v369, %v374
        %v379 = vmul.f32 %v348, %v378
        %v380 = vrot.slane %v364, 4
        %v381 = vadd.f32 %v364, %v380
        %v382 = vrot.slane %v381, 2
        %v383 = vadd.f32 %v381, %v382
        %v384 = vrot.slane %v383, 1
        %v385 = vadd.f32 %v383, %v384
        %v386 = vmul.f32 %v385, %v379
        %v387 = vld [vmem:[%s3] sm:$0xff]
        %v388 = vld [vmem:[%s3 + $0x8] sm:$0xff]
        %v389 = vld [vmem:[%s3 + $0x10] sm:$0xff]
        %v390 = vld [vmem:[%s3 + $0x18] sm:$0xff]
        %v391 = vld [vmem:[%s3 + $0x20] sm:$0xff]
        %v392 = vld [vmem:[%s3 + $0x28] sm:$0xff]
        %v393 = vld [vmem:[%s3 + $0x30] sm:$0xff]
        %v394 = vld [vmem:[%s3 + $0x38] sm:$0xff]
        %v395 = vld [vmem:[%s3 + $0x40] sm:$0xff]
        %v396 = vld [vmem:[%s3 + $0x48] sm:$0xff]
        %v397 = vld [vmem:[%s3 + $0x50] sm:$0xff]
        %v398 = vld [vmem:[%s3 + $0x58] sm:$0xff]
        %v399 = vld [vmem:[%s3 + $0x60] sm:$0xff]
        %v400 = vld [vmem:[%s3 + $0x68] sm:$0xff]
        %v401 = vld [vmem:[%s3 + $0x70] sm:$0xff]
        %v402 = vld [vmem:[%s3 + $0x78] sm:$0xff]
        %v403 = vld [vmem:[%s4] sm:$0x1]
        %v405 = vperm.slane %v403, 0
        %407 = vmatpush.msra.mxu0 %v402
        %408 = vmatpush.msra.mxu0 %v401
        %409 = vmatpush.msra.mxu0 %v400
        %410 = vmatpush.msra.mxu0 %v399
        %411 = vmatpush.msra.mxu0 %v398
        %412 = vmatpush.msra.mxu0 %v397
        %413 = vmatpush.msra.mxu0 %v396
        %414 = vmatpush.msra.mxu0 %v395
        %415 = vmatpush.msra.mxu0 %v394
        %416 = vmatpush.msra.mxu0 %v393
        %417 = vmatpush.msra.mxu0 %v392
        %418 = vmatpush.msra.mxu0 %v391
        %419 = vmatpush.msra.mxu0 %v390
        %420 = vmatpush.msra.mxu0 %v389
        %421 = vmatpush.msra.mxu0 %v388
        %422 = vmatpush.msra.mxu0 %v387
        %423 = vmatmul.f32.gmra.mxu0 %v386
        %v424 = vpop.f32.mrf.mxu0
        %v425 = vadd.f32 %v405, %v424
        %426 = vdwg.mxu0
        %v427 = vadd.f32 %v425, %v364
        %v428 = vld [vmem:[%s5] sm:$0xff]
        %v429 = vld [vmem:[%s5 + $0x8] sm:$0xff]
        %v430 = vld [vmem:[%s5 + $0x10] sm:$0xff]
        %v431 = vld [vmem:[%s5 + $0x18] sm:$0xff]
        %v432 = vld [vmem:[%s5 + $0x20] sm:$0xff]
        %v433 = vld [vmem:[%s5 + $0x28] sm:$0xff]
        %v434 = vld [vmem:[%s5 + $0x30] sm:$0xff]
        %v435 = vld [vmem:[%s5 + $0x38] sm:$0xff]
        %v436 = vld [vmem:[%s5 + $0x40] sm:$0xff]
        %v437 = vld [vmem:[%s5 + $0x48] sm:$0xff]
        %v438 = vld [vmem:[%s5 + $0x50] sm:$0xff]
        %v439 = vld [vmem:[%s5 + $0x58] sm:$0xff]
        %v440 = vld [vmem:[%s5 + $0x60] sm:$0xff]
        %v441 = vld [vmem:[%s5 + $0x68] sm:$0xff]
        %v442 = vld [vmem:[%s5 + $0x70] sm:$0xff]
        %v443 = vld [vmem:[%s5 + $0x78] sm:$0xff]
        %v444 = vld [vmem:[%s6] sm:$0x1]
        %v446 = vperm.slane %v444, 0
        %448 = vmatpush.msra.mxu0 %v443
        %449 = vmatpush.msra.mxu0 %v442
        %450 = vmatpush.msra.mxu0 %v441
        %451 = vmatpush.msra.mxu0 %v440
        %452 = vmatpush.msra.mxu0 %v439
        %453 = vmatpush.msra.mxu0 %v438
        %454 = vmatpush.msra.mxu0 %v437
        %455 = vmatpush.msra.mxu0 %v436
        %456 = vmatpush.msra.mxu0 %v435
        %457 = vmatpush.msra.mxu0 %v434
        %458 = vmatpush.msra.mxu0 %v433
        %459 = vmatpush.msra.mxu0 %v432
        %460 = vmatpush.msra.mxu0 %v431
        %461 = vmatpush.msra.mxu0 %v430
        %462 = vmatpush.msra.mxu0 %v429
        %463 = vmatpush.msra.mxu0 %v428
        %464 = vmatmul.f32.gmra.mxu0 %v427
        %v465 = vpop.f32.mrf.mxu0
        %v466 = vadd.f32 %v446, %v465
        %467 = vdwg.mxu0
        %468 = vst.msk [vmem:[%s286] sm:$0xff] %vm306, %v466
        %s469 = sand.u32 %s182, 1
        %s470 = scalar_lea.sflag [#allocation4], %s469
        %s471 = sand.u32 %s182, 1
        %s472 = smul.addr %s471, 8
        %s473 = scalar_lea.vmem [#allocation5], %s472
        // Predicated region
        $region53: #{tpu_custom_call.1} parent=47 // pred_check
          %p474 = pneg %p192
        $region54: #{tpu_custom_call.1} parent=47 // pred_check_branch
          %476 = sbr.rel (%p474) target = $region56
        $region55: #{tpu_custom_call.1} parent=47 // pred_region
          %478 = vsyncadd %s470, 0
          %s479 = smul.addr %s22, 8
          %s480 = scalar_lea.hbm %s7, %s479
          %s482 = sshll.u32 %s473, 4
          %s483 = int_to_ptr.vmem [resolvable:$true] %s482
          %s484 = sshll.u32 %s480, 4
          %s485 = int_to_ptr.hbm [resolvable:$true] %s484
          %487 = dma.vmem_to_hbm [thread:$0]  %s483, 128, %s485, %s470
        $region56: #{tpu_custom_call.1} parent=47 // pred_fallthru
          _
      $region48: #{tpu_custom_call.1} parent=5 // pred_fallthru
        _
      %p488 = scmp.le.s32.totalorder 2, %s17
      // Predicated region
      $region57: #{tpu_custom_call.1} parent=5 // pred_check
        %p489 = pneg %p488
      $region58: #{tpu_custom_call.1} parent=5 // pred_check_branch
        %491 = sbr.rel (%p489) target = $region60
      $region59: #{tpu_custom_call.1} parent=5 // pred_region
        %s492 = ssub.s32 %s17, 2
        // Predicated region
        $region61: #{tpu_custom_call.1} parent=59 // pred_check
          %p493 = pneg %p198
        $region62: #{tpu_custom_call.1} parent=59 // pred_check_branch
          %495 = sbr.rel (%p493) target = $region64
        $region63: #{tpu_custom_call.1} parent=59 // pred_region
          %s496 = sand.u32 %s183, 1
          %s497 = scalar_lea.sflag [#allocation4], %s496
          %s498 = sand.u32 %s183, 1
          %s499 = smul.addr %s498, 8
          %s500 = scalar_lea.vmem [#allocation5], %s499
          %502 = dma.done %s497, 128
        $region64: #{tpu_custom_call.1} parent=59 // pred_fallthru
          _
      $region60: #{tpu_custom_call.1} parent=5 // pred_fallthru
        _
    $region6: #{tpu_custom_call.1} parent=1 // loop_footer
      %s21 = sadd.s32 1, %s17
    $region7: #{tpu_custom_call.1} parent=1 // loop_footer_branch
      %16 = sbr.rel target = $region3
    $region8: #{tpu_custom_call.1} parent=1 // loop_exit
      _
    %503 = vsyncpa [#allocation3], 1
    %s504 = scalar_lea.sflag [#allocation3], 1
    %505 = vsyncpa %s504, 1
    %506 = vsyncpa [#allocation4], 1
    %s507 = scalar_lea.sflag [#allocation4], 1
    %508 = vsyncpa %s507, 1

</llo_original>
